<compile_context>
chip_gen: v7x
topology: tpu7x:2x2x1
jax: 0.10.0
libtpu: 0.0.40
codegen_flags: <defaults>
</compile_context>

<pallas_src>
import functools

import jax
import jax.numpy as jnp
from jax.experimental import pallas as pl
from jax.experimental.pallas import tpu as pltpu


# ---------------------------------------------------------------------------
# Small host-side helpers
# ---------------------------------------------------------------------------
def _cdiv(a, b):
    return -(-a // b)


def _round_up(v, m):
    return _cdiv(v, m) * m


def _vmem_capacity_bytes():
    try:
        return int(pltpu.get_tpu_info().vmem_capacity_bytes)
    except Exception:
        return 64 * 1024 * 1024          # conservative (v7x per-TensorCore)


def _num_tensorcores_per_chip():
    """Best-effort TensorCore-per-chip count (v7x: 2, v5e/v6e: 1)."""
    try:
        info = pltpu.get_tpu_info()
        for attr in ("num_cores", "core_count", "num_tensorcores",
                     "tensorcores_per_chip", "cores_per_chip"):
            v = getattr(info, attr, None)
            if isinstance(v, int) and v > 0:
                return v
    except Exception:
        pass
    try:
        kind = jax.devices()[0].device_kind.lower()
        if "v7" in kind or "tpu7" in kind:
            return 2
    except Exception:
        pass
    return 1


# ---------------------------------------------------------------------------
# Parameter packing: W1, W2^T, lane-broadcast b1, b2 -> one (3*Cr + 1, C) tile.
# ---------------------------------------------------------------------------
def _pack_params(w1, b1, w2, b2):
    cr, c = w1.shape
    return jnp.concatenate(
        [
            w1.astype(jnp.float32),                                      # [0, cr)
            w2.T.astype(jnp.float32),                                    # [cr, 2cr)
            jnp.broadcast_to(b1.astype(jnp.float32)[:, None], (cr, c)),  # [2cr, 3cr)
            b2.astype(jnp.float32)[None, :],                             # row 3cr
        ],
        axis=0,
    )


def _se_scale(pooled, p_ref, cr):
    """Squeeze-excite on the VPU: pooled (nb, C) -> sigmoid scale (nb, C).

    Lane-major throughout: each relu(w1_j . pooled + b1_j) scalar is carried
    as a lane-broadcast row -> no MXU, no cross-lane extracts.  cr is tiny
    (channel // reduction), so the static unroll is cheap.
    """
    acc = p_ref[3 * cr : 3 * cr + 1, :]                       # b2, (1, C)
    for j in range(cr):
        w1_row = p_ref[j : j + 1, :]                          # (1, C)
        w2t_row = p_ref[cr + j : cr + j + 1, :]               # (1, C)
        b1_row = p_ref[2 * cr + j : 2 * cr + j + 1, :]        # (1, C), const lanes
        s = jnp.sum(w1_row * pooled, axis=-1, keepdims=True)  # (nb, 1) lane reduce
        y1 = jnp.maximum(s + b1_row, 0.0)                     # (nb, C)
        acc = acc + w2t_row * y1                              # (nb, C)
    return jax.nn.sigmoid(acc)


# ---------------------------------------------------------------------------
# Fused single-pass kernel: whole (nb, C, HW) slab resident per grid step.
# ---------------------------------------------------------------------------
def _ca_fused_kernel(x_ref, p_ref, o_ref, *, cr, inv_hw, hw, needs_mask):
    x = x_ref[...]                                            # (nb, C, HW)
    if needs_mask:
        # HW is not a multiple of 128: explicitly exclude physical lane
        # padding from the pooled sum (padding content is not guaranteed zero).
        lane = jax.lax.broadcasted_iota(jnp.int32, x.shape, 2)
        xm = jnp.where(lane < hw, x, jnp.zeros((), x.dtype))
        pooled = jnp.sum(xm, axis=-1, dtype=jnp.float32) * inv_hw
    else:
        pooled = jnp.sum(x, axis=-1, dtype=jnp.float32) * inv_hw
    scale = _se_scale(pooled, p_ref, cr).astype(x.dtype)      # (nb, C)
    o_ref[...] = (x * scale[:, :, None]).astype(o_ref.dtype)


# ---------------------------------------------------------------------------
# Two-pass tiled kernels for large H*W (slab would not fit in VMEM).
# ---------------------------------------------------------------------------
def _pool_kernel(x_ref, psum_ref, *, hw, hw_tile, tiles_per_par, needs_mask):
    """Pass 1: per-channel partial sums over HW tiles (optionally split over
    2 TensorCores via the parallel `p` axis)."""
    t = pl.program_id(2)

    @pl.when(t == 0)
    def _():
        psum_ref[...] = jnp.zeros_like(psum_ref)

    x = x_ref[...]                                            # (1, C, hw_tile)
    if needs_mask:
        # Ragged / phantom tiles: zero out lanes whose global index >= HW.
        start = (pl.program_id(1) * tiles_per_par + t) * hw_tile
        lane = jax.lax.broadcasted_iota(jnp.int32, x.shape, 2) + start
        x = jnp.where(lane < hw, x, jnp.zeros((), x.dtype))
    psum_ref[0] += jnp.sum(x, axis=-1, dtype=jnp.float32)     # (1, C)


def _rescale_kernel(x_ref, psum_ref, p_ref, o_ref, *, cr, inv_hw, n_par):
    """Pass 2: combine pooled partials, recompute the (tiny) SE, rescale tile."""
    ps = psum_ref[...]                                        # (1, n_par, C)
    pooled = ps[:, 0, :]
    for p in range(1, n_par):
        pooled = pooled + ps[:, p, :]
    pooled = pooled * inv_hw                                  # (1, C)
    x = x_ref[...]                                            # (1, C, hw_tile)
    scale = _se_scale(pooled, p_ref, cr).astype(x.dtype)      # (1, C)
    o_ref[...] = (x * scale[:, :, None]).astype(o_ref.dtype)


# ---------------------------------------------------------------------------
# Wrapper
# ---------------------------------------------------------------------------
def ca_layer(x_nchw, w1, b1, w2, b2, *, max_block_bytes=None, donate_input=False):
    """x_nchw: (N, C, H, W).  w1: (C//r, C), b1: (C//r,), w2: (C, C//r), b2: (C,)."""
    N, C, H, W = x_nchw.shape
    cr = w1.shape[0]
    assert cr >= 1, "channel // reduction must be >= 1"
    HW = H * W
    itemsize = x_nchw.dtype.itemsize
    inv_hw = 1.0 / float(HW)

    params = _pack_params(w1, b1, w2, b2)                     # (3*cr + 1, C)

    vmem_cap = _vmem_capacity_bytes()
    num_tc = _num_tensorcores_per_chip()

    if max_block_bytes is None:
        # ~16 MiB blocks on 128 MiB-VMEM parts (v5e/v6e), ~8 MiB on v7x (64 MiB).
        hard_cap = (16 << 20) if vmem_cap >= (96 << 20) else (8 << 20)
        max_block_bytes = min(int(vmem_cap * 0.45) // 4, hard_cap)
    max_block_bytes = max(max_block_bytes, C * 128 * itemsize)   # >= one lane tile

    hw128 = _round_up(HW, 128)
    per_image_bytes = C * hw128 * itemsize                    # physical footprint/image

    x_flat = x_nchw.reshape(N, C, HW)                         # no padding, no copies
    aliases = {0: 0} if donate_input else {}

    if per_image_bytes <= max_block_bytes:
        # ----------------------- fused single-pass path -----------------------
        nb = min(N, max(1, max_block_bytes // per_image_bytes))
        # Keep the SE epilogue's (nb, C) f32 temporaries within ~8 vregs each.
        nb = min(nb, max(1, 8192 // C))
        grid_n = _cdiv(N, nb)
        # Only split the batch for a second TensorCore on chips that have one.
        if num_tc >= 2 and grid_n < num_tc and N >= 2 and per_image_bytes >= (1 << 20):
            nb = _cdiv(N, num_tc)
            grid_n = _cdiv(N, nb)
        block_bytes = nb * per_image_bytes
        vmem_limit = min(int(vmem_cap * 0.9),
                         max(7 * block_bytes + (2 << 20), 32 << 20))

        out_flat = pl.pallas_call(
            functools.partial(_ca_fused_kernel, cr=cr, inv_hw=inv_hw,
                              hw=HW, needs_mask=(HW % 128 != 0)),
            out_shape=jax.ShapeDtypeStruct((N, C, HW), x_flat.dtype),
            grid_spec=pltpu.PrefetchScalarGridSpec(
                num_scalar_prefetch=0,
                grid=(grid_n,),
                in_specs=[
                    pl.BlockSpec((nb, C, HW), lambda i: (i, 0, 0)),
                    pl.BlockSpec(params.shape, lambda i: (0, 0)),
                ],
                out_specs=pl.BlockSpec((nb, C, HW), lambda i: (i, 0, 0)),
            ),
            compiler_params=pltpu.CompilerParams(
                dimension_semantics=("parallel",),
                vmem_limit_bytes=vmem_limit,
            ),
            input_output_aliases=aliases,
        )(x_flat, params)
        return out_flat.reshape(N, C, H, W)

    # ----------------------- two-pass tiled path (large H*W) ------------------
    hw_tile = max(128, (max_block_bytes // (C * itemsize)) // 128 * 128)
    n_tiles = _cdiv(HW, hw_tile)
    tile_bytes = C * hw_tile * itemsize
    vmem_limit = min(int(vmem_cap * 0.9),
                     max(7 * tile_bytes + (2 << 20), 32 << 20))

    # On 2-TC chips (v7x) split pass-1 pooling over both cores even when N==1.
    n_par = 2 if (num_tc >= 2 and n_tiles >= 2) else 1
    tiles_per_par = _cdiv(n_tiles, n_par)
    pool_needs_mask = (n_par * tiles_per_par * hw_tile != HW)

    def _x_pool_map(n, p, t, _tpp=tiles_per_par, _last=n_tiles - 1):
        # Clamp phantom steps (odd tile counts) back onto the last real tile;
        # the in-kernel lane mask zeroes their contribution.
        return (n, 0, jnp.minimum(p * _tpp + t, _last))

    # Pass 1: pooled partial sums, accumulated across the "arbitrary" tile axis.
    psum = pl.pallas_call(
        functools.partial(_pool_kernel, hw=HW, hw_tile=hw_tile,
                          tiles_per_par=tiles_per_par, needs_mask=pool_needs_mask),
        out_shape=jax.ShapeDtypeStruct((N, n_par, C), jnp.float32),
        grid_spec=pltpu.PrefetchScalarGridSpec(
            num_scalar_prefetch=0,
            grid=(N, n_par, tiles_per_par),
            in_specs=[pl.BlockSpec((1, C, hw_tile), _x_pool_map)],
            out_specs=pl.BlockSpec((1, 1, C), lambda n, p, t: (n, p, 0)),
        ),
        compiler_params=pltpu.CompilerParams(
            dimension_semantics=("parallel", "parallel", "arbitrary"),
            vmem_limit_bytes=vmem_limit,
        ),
    )(x_flat)

    # Pass 2: stream HW tiles; combine partials + tiny SE per tile; rescale.
    out_flat = pl.pallas_call(
        functools.partial(_rescale_kernel, cr=cr, inv_hw=inv_hw, n_par=n_par),
        out_shape=jax.ShapeDtypeStruct((N, C, HW), x_flat.dtype),
        grid_spec=pltpu.PrefetchScalarGridSpec(
            num_scalar_prefetch=0,
            grid=(N, n_tiles),
            in_specs=[
                pl.BlockSpec((1, C, hw_tile), lambda n, t: (n, 0, t)),
                pl.BlockSpec((1, n_par, C), lambda n, t: (n, 0, 0)),
                pl.BlockSpec(params.shape, lambda n, t: (0, 0)),
            ],
            out_specs=pl.BlockSpec((1, C, hw_tile), lambda n, t: (n, 0, t)),
        ),
        compiler_params=pltpu.CompilerParams(
            dimension_semantics=("parallel", "parallel"),
            vmem_limit_bytes=vmem_limit,
        ),
        input_output_aliases=aliases,
    )(x_flat, psum, params)
    return out_flat.reshape(N, C, H, W)


# ---------------------------------------------------------------------------
# Pure-JAX reference matching the PyTorch forward.
# ---------------------------------------------------------------------------
def _reference(x, w1, b1, w2, b2):
    y = jnp.mean(x, axis=(2, 3), keepdims=True)               # (N, C, 1, 1)
    y = jnp.einsum('oc,ncij->noij', w1, y) + b1[None, :, None, None]
    y = jnp.maximum(y, 0.0)
    y = jnp.einsum('oc,ncij->noij', w2, y) + b2[None, :, None, None]
    return x * jax.nn.sigmoid(y)


if __name__ == "__main__":
    # CALayer(channel=32, reduction=16): conv1 32->2, conv2 2->32.
    channel, reduction = 32, 16
    cr = channel // reduction

    key = jax.random.PRNGKey(0)
    kx, k1, k2, k3, k4, kx2 = jax.random.split(key, 6)

    w1 = jax.random.normal(k1, (cr, channel), dtype=jnp.float32) * 0.1   # (Cout, Cin)
    b1 = jax.random.normal(k2, (cr,), dtype=jnp.float32) * 0.1
    b2 = jax.random.normal(k4, (channel,), dtype=jnp.float32) * 0.1
    w2 = jax.random.normal(k3, (channel, cr), dtype=jnp.float32) * 0.1

    def check(out, ref, name):
        assert out.shape == ref.shape, name
        assert jnp.allclose(out, ref, atol=2e-5, rtol=1e-4), f"{name} mismatch"

    # --- aligned spatial size (H*W multiple of 128) --------------------------
    N, H, W = 2, 16, 16
    x = jax.random.normal(kx, (N, channel, H, W), dtype=jnp.float32)
    ref = _reference(x, w1, b1, w2, b2)

    # 1) Default path: whole batch in one fused grid step.
    check(jax.block_until_ready(ca_layer(x, w1, b1, w2, b2)), ref, "fused")
    # 2) Force per-image fused blocks (grid over N).
    check(jax.block_until_ready(
        ca_layer(x, w1, b1, w2, b2, max_block_bytes=channel * H * W * 4)),
        ref, "per-image fused")
    # 3) Force the two-pass HW-tiled path.
    check(jax.block_until_ready(
        ca_layer(x, w1, b1, w2, b2, max_block_bytes=channel * 128 * 4)),
        ref, "tiled")

    # --- unaligned spatial size (H*W = 324, not a multiple of 128) -----------
    N2, H2, W2 = 3, 18, 18
    x2 = jax.random.normal(kx2, (N2, channel, H2, W2), dtype=jnp.float32)
    ref2 = _reference(x2, w1, b1, w2, b2)

    # 4) Fused path with lane masking in the pooled sum.
    check(jax.block_until_ready(ca_layer(x2, w1, b1, w2, b2)), ref2, "fused ragged-HW")
    # 5) Fused path with a ragged batch block (nb=2 over N=3).
    check(jax.block_until_ready(
        ca_layer(x2, w1, b1, w2, b2,
                 max_block_bytes=2 * channel * ((H2 * W2 + 127) // 128 * 128) * 4)),
        ref2, "fused ragged-N")
    # 6) Tiled path with a ragged last HW tile (masked pool + partial store).
    check(jax.block_until_ready(
        ca_layer(x2, w1, b1, w2, b2, max_block_bytes=channel * 128 * 4)),
        ref2, "tiled ragged-HW")

    print("KERNEL_OK")
</pallas_src>

<mosaic_0001>
module attributes {stable_mosaic.version = 11 : i64} {
  func.func @_ca_fused_kernel(%arg0: i32, %arg1: memref<2x32x256xf32, #tpu.memory_space<vmem>>, %arg2: memref<7x32xf32, #tpu.memory_space<vmem>>, %arg3: memref<2x32x256xf32, #tpu.memory_space<vmem>>) attributes {dimension_semantics = [#tpu.dimension_semantics<parallel>], iteration_bounds = array<i64: 1>, scalar_prefetch = 0 : i64, scratch_operands = 0 : i64, tpu.core_type = #tpu.core_type<tc>, window_params = [{transform_indices = @transform_0, window_bounds = array<i64: 2, 32, 256>}, {pipeline_mode = #tpu.pipeline_mode<synchronous>, transform_indices = @transform_1, window_bounds = array<i64: 7, 32>}, {transform_indices = @transform_2, window_bounds = array<i64: 2, 32, 256>}]} {
    %c0 = arith.constant 0 : index
    %c0_0 = arith.constant 0 : index
    %c0_1 = arith.constant 0 : index
    %0 = vector.load %arg1[%c0, %c0_0, %c0_1] : memref<2x32x256xf32, #tpu.memory_space<vmem>>, vector<2x32x256xf32>
    %cst = arith.constant dense<0.000000e+00> : vector<2x32xf32>
    %1 = vector.multi_reduction <add>, %0, %cst [2] : vector<2x32x256xf32> to vector<2x32xf32>
    %cst_2 = arith.constant 3.906250e-03 : f32
    %2 = vector.broadcast %cst_2 : f32 to vector<2x32xf32>
    %3 = arith.mulf %1, %2 : vector<2x32xf32>
    %c6 = arith.constant 6 : index
    %c0_3 = arith.constant 0 : index
    %4 = vector.load %arg2[%c6, %c0_3] : memref<7x32xf32, #tpu.memory_space<vmem>>, vector<1x32xf32>
    %c0_4 = arith.constant 0 : index
    %c0_5 = arith.constant 0 : index
    %5 = vector.load %arg2[%c0_4, %c0_5] : memref<7x32xf32, #tpu.memory_space<vmem>>, vector<1x32xf32>
    %c2 = arith.constant 2 : index
    %c0_6 = arith.constant 0 : index
    %6 = vector.load %arg2[%c2, %c0_6] : memref<7x32xf32, #tpu.memory_space<vmem>>, vector<1x32xf32>
    %c4 = arith.constant 4 : index
    %c0_7 = arith.constant 0 : index
    %7 = vector.load %arg2[%c4, %c0_7] : memref<7x32xf32, #tpu.memory_space<vmem>>, vector<1x32xf32>
    %8 = vector.broadcast %5 : vector<1x32xf32> to vector<2x32xf32>
    %9 = arith.mulf %8, %3 : vector<2x32xf32>
    %cst_8 = arith.constant dense<0.000000e+00> : vector<2xf32>
    %10 = vector.multi_reduction <add>, %9, %cst_8 [1] : vector<2x32xf32> to vector<2xf32>
    %11 = vector.shape_cast %10 : vector<2xf32> to vector<2x1xf32>
    %12 = vector.broadcast %11 : vector<2x1xf32> to vector<2x32xf32>
    %13 = vector.broadcast %7 : vector<1x32xf32> to vector<2x32xf32>
    %14 = arith.addf %12, %13 : vector<2x32xf32>
    %cst_9 = arith.constant 0.000000e+00 : f32
    %15 = vector.broadcast %cst_9 : f32 to vector<2x32xf32>
    %16 = arith.maximumf %14, %15 : vector<2x32xf32>
    %17 = vector.broadcast %6 : vector<1x32xf32> to vector<2x32xf32>
    %18 = arith.mulf %17, %16 : vector<2x32xf32>
    %19 = vector.broadcast %4 : vector<1x32xf32> to vector<2x32xf32>
    %20 = arith.addf %19, %18 : vector<2x32xf32>
    %c1 = arith.constant 1 : index
    %c0_10 = arith.constant 0 : index
    %21 = vector.load %arg2[%c1, %c0_10] : memref<7x32xf32, #tpu.memory_space<vmem>>, vector<1x32xf32>
    %c3 = arith.constant 3 : index
    %c0_11 = arith.constant 0 : index
    %22 = vector.load %arg2[%c3, %c0_11] : memref<7x32xf32, #tpu.memory_space<vmem>>, vector<1x32xf32>
    %c5 = arith.constant 5 : index
    %c0_12 = arith.constant 0 : index
    %23 = vector.load %arg2[%c5, %c0_12] : memref<7x32xf32, #tpu.memory_space<vmem>>, vector<1x32xf32>
    %24 = vector.broadcast %21 : vector<1x32xf32> to vector<2x32xf32>
    %25 = arith.mulf %24, %3 : vector<2x32xf32>
    %cst_13 = arith.constant dense<0.000000e+00> : vector<2xf32>
    %26 = vector.multi_reduction <add>, %25, %cst_13 [1] : vector<2x32xf32> to vector<2xf32>
    %27 = vector.shape_cast %26 : vector<2xf32> to vector<2x1xf32>
    %28 = vector.broadcast %27 : vector<2x1xf32> to vector<2x32xf32>
    %29 = vector.broadcast %23 : vector<1x32xf32> to vector<2x32xf32>
    %30 = arith.addf %28, %29 : vector<2x32xf32>
    %cst_14 = arith.constant 0.000000e+00 : f32
    %31 = vector.broadcast %cst_14 : f32 to vector<2x32xf32>
    %32 = arith.maximumf %30, %31 : vector<2x32xf32>
    %33 = vector.broadcast %22 : vector<1x32xf32> to vector<2x32xf32>
    %34 = arith.mulf %33, %32 : vector<2x32xf32>
    %35 = arith.addf %20, %34 : vector<2x32xf32>
    %36 = arith.negf %35 : vector<2x32xf32>
    %37 = math.exp %36 : vector<2x32xf32>
    %cst_15 = arith.constant 1.000000e+00 : f32
    %38 = vector.broadcast %cst_15 : f32 to vector<2x32xf32>
    %39 = arith.addf %38, %37 : vector<2x32xf32>
    %40 = arith.divf %38, %39 : vector<2x32xf32>
    %41 = vector.shape_cast %40 : vector<2x32xf32> to vector<2x32x1xf32>
    %42 = vector.broadcast %41 : vector<2x32x1xf32> to vector<2x32x256xf32>
    %43 = arith.mulf %0, %42 : vector<2x32x256xf32>
    %c0_16 = arith.constant 0 : index
    %c0_17 = arith.constant 0 : index
    %c0_18 = arith.constant 0 : index
    %44 = vector.load %arg3[%c0_16, %c0_17, %c0_18] : memref<2x32x256xf32, #tpu.memory_space<vmem>>, vector<2x32x256xf32>
    tpu.vector_store %arg3[%c0_16, %c0_17, %c0_18], %43 {strides = array<i32>} : memref<2x32x256xf32, #tpu.memory_space<vmem>>, vector<2x32x256xf32>,
    return
  }
  func.func @transform_0(%arg0: i32) -> (i32, i32, i32) {
    %c0_i32 = arith.constant 0 : i32
    %c0_i32_0 = arith.constant 0 : i32
    %c0_i32_1 = arith.constant 0 : i32
    return %arg0, %c0_i32, %c0_i32_0 : i32, i32, i32
  }
  func.func @transform_1(%arg0: i32) -> (i32, i32) {
    %c0_i32 = arith.constant 0 : i32
    %c0_i32_0 = arith.constant 0 : i32
    %c0_i32_1 = arith.constant 0 : i32
    return %c0_i32, %c0_i32_0 : i32, i32
  }
  func.func @transform_2(%arg0: i32) -> (i32, i32, i32) {
    %c0_i32 = arith.constant 0 : i32
    %c0_i32_0 = arith.constant 0 : i32
    %c0_i32_1 = arith.constant 0 : i32
    return %arg0, %c0_i32, %c0_i32_0 : i32, i32, i32
  }
}

</mosaic_0001>

<llo_original>
// kernel: tpu_custom_call.1
$region0: #{tpu_custom_call.1}
  #allocation0 [shape = 'u32[]', space=smem, size = 0x4, offset = 0x4, fixed_abs, tag = 'smem constant byte address 0x4 - core index']
  #allocation1 [shape = 'u32[144,128]{1,0:T(1,128)}', space=vmem, size = 0x12000, scoped, tag = 'internal scratch']
  %s0 = inlined_call_operand.hbm [shape: f32[2,32,256], index: 0, kind: input, shape index: {}]
  %s1 = inlined_call_operand.hbm [shape: f32[7,32], index: 1, kind: input, shape index: {}]
  %s2 = inlined_call_operand.hbm [shape: f32[2,32,256], index: 2, kind: output, shape index: {}]
  %s3 = sld [smem:[#allocation0]]
  $region26: #{tpu_custom_call.1} parent=0
    _
  %s5 = ssub.s32 1, %s3
  %s6 = scalar_select 0, %s5, %s3
  $region1: #{tpu_custom_call.1} parent=0
    #allocation2 [shape = 'u8[65536]{0}', space=vmem, size = 0x10000, scoped, tag = 'input window, operand 0, single buffered']
    #allocation3 [shape = 's32[1]{0}', space=sflag, size = 0x4, scoped, tag = 'scoped memory for tpu_custom_call.1']
    #allocation4 [shape = 's32[1]{0}', space=sflag, size = 0x4, scoped, tag = 'scoped memory for tpu_custom_call.1']
    #allocation5 [shape = 'u8[4096]{0}', space=vmem, size = 0x1000, scoped, tag = 'input window, operand 1, single buffered']
    #allocation6 [shape = 's32[1]{0}', space=sflag, size = 0x4, scoped, tag = 'scoped memory for tpu_custom_call.1']
    #allocation7 [shape = 'u8[65536]{0}', space=vmem, size = 0x10000, scoped, tag = 'output window, operand 0, single buffered']
    %7 = vsyncpa [#allocation3], 0
    %8 = vsyncpa [#allocation6], 0
    %9 = vsyncpa [#allocation4], 0
    // Predicated region
    $region2: #{tpu_custom_call.1} parent=1 // pred_check
      _
    $region3: #{tpu_custom_call.1} parent=1 // pred_check_branch
      %11 = sbr.rel (0) target = $region5
    $region4: #{tpu_custom_call.1} parent=1 // pred_region
      %s13 = ssub.s32 2048, 2048
      %14 = vsyncadd [#allocation3], %s13
      %s15 = sshll.u32 [#allocation2], 4
      %s16 = int_to_ptr.vmem [resolvable:$true] %s15
      %21 = dma.hbm_to_vmem [thread:$0]  %s0, 2048, %s16, [#allocation3], 256, 256, 16
    $region5: #{tpu_custom_call.1} parent=1 // pred_fallthru
      _
    // Predicated region
    $region6: #{tpu_custom_call.1} parent=1 // pred_check
      _
    $region7: #{tpu_custom_call.1} parent=1 // pred_check_branch
      %23 = sbr.rel (0) target = $region9
    $region8: #{tpu_custom_call.1} parent=1 // pred_region
      %s25 = ssub.s32 128, 128
      %26 = vsyncadd [#allocation6], %s25
      %s28 = sshll.u32 [#allocation5], 4
      %s29 = int_to_ptr.vmem [resolvable:$true] %s28
      %31 = dma.hbm_to_vmem [thread:$0]  %s1, 128, %s29, [#allocation6]
    $region9: #{tpu_custom_call.1} parent=1 // pred_fallthru
      _
    // Predicated region
    $region10: #{tpu_custom_call.1} parent=1 // pred_check
      _
    $region11: #{tpu_custom_call.1} parent=1 // pred_check_branch
      %33 = sbr.rel (0) target = $region13
    $region12: #{tpu_custom_call.1} parent=1 // pred_region
      %34 = dma.done [#allocation3], 2048
    $region13: #{tpu_custom_call.1} parent=1 // pred_fallthru
      _
    // Predicated region
    $region14: #{tpu_custom_call.1} parent=1 // pred_check
      _
    $region15: #{tpu_custom_call.1} parent=1 // pred_check_branch
      %36 = sbr.rel (0) target = $region17
    $region16: #{tpu_custom_call.1} parent=1 // pred_region
      %37 = dma.done [#allocation6], 128
    $region17: #{tpu_custom_call.1} parent=1 // pred_fallthru
      _
    %v38 = vld [vmem:[#allocation2] sm:$0xff]
    %v39 = vld [vmem:[#allocation2 + $0x8] sm:$0xff]
    %v40 = vld [vmem:[#allocation2 + $0x10] sm:$0xff]
    %v41 = vld [vmem:[#allocation2 + $0x18] sm:$0xff]
    %v42 = vld [vmem:[#allocation2 + $0x20] sm:$0xff]
    %v43 = vld [vmem:[#allocation2 + $0x28] sm:$0xff]
    %v44 = vld [vmem:[#allocation2 + $0x30] sm:$0xff]
    %v45 = vld [vmem:[#allocation2 + $0x38] sm:$0xff]
    %v46 = vld [vmem:[#allocation2 + $0x40] sm:$0xff]
    %v47 = vld [vmem:[#allocation2 + $0x48] sm:$0xff]
    %v48 = vld [vmem:[#allocation2 + $0x50] sm:$0xff]
    %v49 = vld [vmem:[#allocation2 + $0x58] sm:$0xff]
    %v50 = vld [vmem:[#allocation2 + $0x60] sm:$0xff]
    %v51 = vld [vmem:[#allocation2 + $0x68] sm:$0xff]
    %v52 = vld [vmem:[#allocation2 + $0x70] sm:$0xff]
    %v53 = vld [vmem:[#allocation2 + $0x78] sm:$0xff]
    %v54 = vadd.f32 %v38, %v39
    %55 = vadd.xlane.f32.xlu0 %v54
    %v56 = vpop.xlane.xlu0 %55
    %v57 = vadd.f32 %v40, %v41
    %58 = vadd.xlane.f32.xlu0 %v57
    %v59 = vpop.xlane.xlu0 %58
    %v60 = vadd.f32 %v42, %v43
    %61 = vadd.xlane.f32.xlu0 %v60
    %v62 = vpop.xlane.xlu0 %61
    %v63 = vadd.f32 %v44, %v45
    %64 = vadd.xlane.f32.xlu0 %v63
    %v65 = vpop.xlane.xlu0 %64
    %v66 = vadd.f32 %v46, %v47
    %67 = vadd.xlane.f32.xlu0 %v66
    %v68 = vpop.xlane.xlu0 %67
    %v69 = vadd.f32 %v48, %v49
    %70 = vadd.xlane.f32.xlu0 %v69
    %v71 = vpop.xlane.xlu0 %70
    %v72 = vadd.f32 %v50, %v51
    %73 = vadd.xlane.f32.xlu0 %v72
    %v74 = vpop.xlane.xlu0 %73
    %v75 = vadd.f32 %v52, %v53
    %76 = vadd.xlane.f32.xlu0 %v75
    %v77 = vpop.xlane.xlu0 %76
    %v78 = vmul.f32 %v56, 0.00390625
    %v79 = vmul.f32 %v59, 0.00390625
    %v80 = vmul.f32 %v62, 0.00390625
    %v81 = vmul.f32 %v65, 0.00390625
    %v82 = vmul.f32 %v68, 0.00390625
    %v83 = vmul.f32 %v71, 0.00390625
    %v84 = vmul.f32 %v74, 0.00390625
    %v85 = vmul.f32 %v77, 0.00390625
    %v86 = vld [vmem:[#allocation5 + $0x6] sm:$0x1]
    %v87 = vld [vmem:[#allocation5] sm:$0x1]
    %v88 = vld [vmem:[#allocation5 + $0x2] sm:$0x1]
    %v89 = vld [vmem:[#allocation5 + $0x4] sm:$0x1]
    %v90 = vlaneseq
    %v91 = vshrl.u32 %v90, 7
    %v92 = vsub.s32 0, %v91
    %v93 = vrot.slane %v87, %v92
    %v102 = vlaneseq
    %v103 = vand.u32 %v102, 127
    %v104 = vlaneseq
    %v105 = vshrl.u32 %v104, 7
    %v106 = vsub.s32 %v103, %v105
    %v107 = vrot.slane %v78, %v106
    %v108 = vadd.s32 %v103, 4294967288
    %v109 = vlaneseq
    %v110 = vshrl.u32 %v109, 7
    %v111 = vsub.s32 %v108, %v110
    %v112 = vrot.slane %v79, %v111
    %vm113 = vcmask 130112
    %v114 = vsel %vm113, %v112, %v107
    %v115 = vadd.s32 %v103, 4294967280
    %v116 = vlaneseq
    %v117 = vshrl.u32 %v116, 7
    %v118 = vsub.s32 %v115, %v117
    %v119 = vrot.slane %v80, %v118
    %vm120 = vcmask 195712
    %v121 = vsel %vm120, %v119, %v114
    %v122 = vadd.s32 %v103, 4294967272
    %v123 = vlaneseq
    %v124 = vshrl.u32 %v123, 7
    %v125 = vsub.s32 %v122, %v124
    %v126 = vrot.slane %v81, %v125
    %vm127 = vcmask 261312
    %v128 = vsel %vm127, %v126, %v121
    %v129 = vlaneseq
    %v130 = vshrl.u32 %v129, 7
    %v131 = vsub.s32 %v103, %v130
    %v132 = vrot.slane %v82, %v131
    %v133 = vlaneseq
    %v134 = vshrl.u32 %v133, 7
    %v135 = vsub.s32 %v108, %v134
    %v136 = vrot.slane %v83, %v135
    %v137 = vsel %vm113, %v136, %v132
    %v138 = vlaneseq
    %v139 = vshrl.u32 %v138, 7
    %v140 = vsub.s32 %v115, %v139
    %v141 = vrot.slane %v84, %v140
    %v142 = vsel %vm120, %v141, %v137
    %v143 = vlaneseq
    %v144 = vshrl.u32 %v143, 7
    %v145 = vsub.s32 %v122, %v144
    %v146 = vrot.slane %v85, %v145
    %v147 = vsel %vm127, %v146, %v142
    %vm148 = vcmask 1041409
    %v149 = vsel %vm148, %v147, %v128
    %v151 = vmul.f32 %v93, %v149
    %vm152 = vcmask 254976
    %v153 = vsel %vm152, %v151, 0.0
    %154 = vadd.xlane.f32.xlu0 %v153
    %v155 = vpop.xlane.xlu0 %154
    %v156 = vlaneseq
    %v157 = vshrl.u32 %v156, 7
    %v158 = vsub.s32 0, %v157
    %v159 = vrot.slane %v89, %v158
    %v160 = vadd.f32 %v155, %v159
    %v161 = vmax.f32 %v160, 0.0
    %v162 = vlaneseq
    %v163 = vshrl.u32 %v162, 7
    %v164 = vsub.s32 0, %v163
    %v165 = vrot.slane %v88, %v164
    %v166 = vmul.f32 %v165, %v161
    %v167 = vlaneseq
    %v168 = vshrl.u32 %v167, 7
    %v169 = vsub.s32 0, %v168
    %v170 = vrot.slane %v86, %v169
    %v171 = vadd.f32 %v170, %v166
    %v172 = vld [vmem:[#allocation5 + $0x1] sm:$0x1]
    %v173 = vld [vmem:[#allocation5 + $0x3] sm:$0x1]
    %v174 = vld [vmem:[#allocation5 + $0x5] sm:$0x1]
    %v175 = vlaneseq
    %v176 = vshrl.u32 %v175, 7
    %v177 = vsub.s32 0, %v176
    %v178 = vrot.slane %v172, %v177
    %v179 = vmul.f32 %v178, %v149
    %v180 = vsel %vm152, %v179, 0.0
    %181 = vadd.xlane.f32.xlu0 %v180
    %v182 = vpop.xlane.xlu0 %181
    %v183 = vlaneseq
    %v184 = vshrl.u32 %v183, 7
    %v185 = vsub.s32 0, %v184
    %v186 = vrot.slane %v174, %v185
    %v187 = vadd.f32 %v182, %v186
    %v188 = vmax.f32 %v187, 0.0
    %v189 = vlaneseq
    %v190 = vshrl.u32 %v189, 7
    %v191 = vsub.s32 0, %v190
    %v192 = vrot.slane %v173, %v191
    %v193 = vmul.f32 %v192, %v188
    %v194 = vadd.f32 %v171, %v193
    %v195 = vxor.u32 %v194, 2147483648
    %v196 = vmul.f32 %v195, 1.442695
    %v197 = vpow.pop %v196
    %v198 = vadd.f32 %v197, 1.0
    %v199 = vrcp.pop %v198
    %v200 = vmul.f32 1.0, %v199
    %v201 = vlaneseq
    %v202 = vshrl.u32 %v201, 7
    %v203 = vsub.s32 0, %v202
    %v204 = vrot.slane %v200, %v203
    %206 = vbcast.lane.b32.xlu0 %v204, 256
    %v207 = vpop.permute.xlu0 %206
    %s209 = sor.u32 256, 8
    %210 = vbcast.lane.b32.xlu0 %v204, %s209
    %v211 = vpop.permute.xlu0 %210
    %s213 = sor.u32 256, 16
    %214 = vbcast.lane.b32.xlu0 %v204, %s213
    %v215 = vpop.permute.xlu0 %214
    %s217 = sor.u32 256, 24
    %218 = vbcast.lane.b32.xlu0 %v204, %s217
    %v219 = vpop.permute.xlu0 %218
    %v220 = vlaneseq
    %v221 = vshrl.u32 %v220, 7
    %v222 = vsub.s32 1, %v221
    %v223 = vrot.slane %v200, %v222
    %225 = vbcast.lane.b32.xlu0 %v223, 256
    %v226 = vpop.permute.xlu0 %225
    %s228 = sor.u32 256, 8
    %229 = vbcast.lane.b32.xlu0 %v223, %s228
    %v230 = vpop.permute.xlu0 %229
    %s232 = sor.u32 256, 16
    %233 = vbcast.lane.b32.xlu0 %v223, %s232
    %v234 = vpop.permute.xlu0 %233
    %s236 = sor.u32 256, 24
    %237 = vbcast.lane.b32.xlu0 %v223, %s236
    %v238 = vpop.permute.xlu0 %237
    %v239 = vmul.f32 %v38, %v207
    %v240 = vmul.f32 %v39, %v207
    %v241 = vmul.f32 %v40, %v211
    %v242 = vmul.f32 %v41, %v211
    %v243 = vmul.f32 %v42, %v215
    %v244 = vmul.f32 %v43, %v215
    %v245 = vmul.f32 %v44, %v219
    %v246 = vmul.f32 %v45, %v219
    %v247 = vmul.f32 %v46, %v226
    %v248 = vmul.f32 %v47, %v226
    %v249 = vmul.f32 %v48, %v230
    %v250 = vmul.f32 %v49, %v230
    %v251 = vmul.f32 %v50, %v234
    %v252 = vmul.f32 %v51, %v234
    %v253 = vmul.f32 %v52, %v238
    %v254 = vmul.f32 %v53, %v238
    %255 = vst [vmem:[#allocation7] sm:$0xff] %v239
    %256 = vst [vmem:[#allocation7 + $0x8] sm:$0xff] %v240
    %257 = vst [vmem:[#allocation7 + $0x10] sm:$0xff] %v241
    %258 = vst [vmem:[#allocation7 + $0x18] sm:$0xff] %v242
    %259 = vst [vmem:[#allocation7 + $0x20] sm:$0xff] %v243
    %260 = vst [vmem:[#allocation7 + $0x28] sm:$0xff] %v244
    %261 = vst [vmem:[#allocation7 + $0x30] sm:$0xff] %v245
    %262 = vst [vmem:[#allocation7 + $0x38] sm:$0xff] %v246
    %263 = vst [vmem:[#allocation7 + $0x40] sm:$0xff] %v247
    %264 = vst [vmem:[#allocation7 + $0x48] sm:$0xff] %v248
    %265 = vst [vmem:[#allocation7 + $0x50] sm:$0xff] %v249
    %266 = vst [vmem:[#allocation7 + $0x58] sm:$0xff] %v250
    %267 = vst [vmem:[#allocation7 + $0x60] sm:$0xff] %v251
    %268 = vst [vmem:[#allocation7 + $0x68] sm:$0xff] %v252
    %269 = vst [vmem:[#allocation7 + $0x70] sm:$0xff] %v253
    %270 = vst [vmem:[#allocation7 + $0x78] sm:$0xff] %v254
    // Predicated region
    $region18: #{tpu_custom_call.1} parent=1 // pred_check
      _
    $region19: #{tpu_custom_call.1} parent=1 // pred_check_branch
      %272 = sbr.rel (0) target = $region21
    $region20: #{tpu_custom_call.1} parent=1 // pred_region
      %s274 = ssub.s32 2048, 2048
      %275 = vsyncadd [#allocation4], %s274
      %s276 = sshll.u32 [#allocation7], 4
      %s277 = int_to_ptr.vmem [resolvable:$true] %s276
      %282 = dma.vmem_to_hbm [thread:$0]  %s277, 2048, %s2, [#allocation4], 256, 256, 16
    $region21: #{tpu_custom_call.1} parent=1 // pred_fallthru
      _
    // Predicated region
    $region22: #{tpu_custom_call.1} parent=1 // pred_check
      _
    $region23: #{tpu_custom_call.1} parent=1 // pred_check_branch
      %284 = sbr.rel (0) target = $region25
    $region24: #{tpu_custom_call.1} parent=1 // pred_region
      %285 = dma.done [#allocation4], 2048
    $region25: #{tpu_custom_call.1} parent=1 // pred_fallthru
      _
    %286 = vsyncpa [#allocation3], 1
    %287 = vsyncpa [#allocation6], 1
    %288 = vsyncpa [#allocation4], 1

</llo_original>
